<compile_context>
chip_gen: v7x
topology: tpu7x:2x2x1
jax: 0.10.0
libtpu: 0.0.40
codegen_flags: <defaults>
</compile_context>

<pallas_src>
import jax
import jax.numpy as jnp
from jax.experimental import pallas as pl
from jax.experimental.pallas import tpu as pltpu


def _identity_kernel(x_ref, o_ref):
    # Whole-tile load + store: pure VMEM copy, DMA-bound.
    o_ref[...] = x_ref[...]


_LANE = 128
# itemsize (bytes) -> minimum sublane tile for packed dtypes
_SUBLANE_MIN = {4: 8, 2: 16, 1: 32}


def nop_forward(x):
    """Identity forward pass (PyTorch `nop.forward`) as a Pallas TPU kernel."""
    orig_shape = x.shape
    n = x.size
    if n == 0:
        return x

    itemsize = jnp.dtype(x.dtype).itemsize
    sub_min = _SUBLANE_MIN.get(itemsize, 8)

    flat = x.reshape(-1)  # pure bitcast for contiguous row-major input
    rows = n // _LANE

    if n % _LANE != 0 or rows % sub_min != 0:
        # Awkward (small / non-lane-aligned) size: single full-extent block.
        # Block shape == full array dims, so the (sub, 128) tiling constraint
        # is waived and no padding/slicing passes are needed.
        # TODO(synk): huge tensors with non-128-divisible element counts would
        # need a padded tiling path; not required for this module's shapes.
        x2d = flat.reshape(1, n)
        out2d = pl.pallas_call(
            _identity_kernel,
            out_shape=jax.ShapeDtypeStruct((1, n), x.dtype),
            input_output_aliases={0: 0},
        )(x2d)
        return out2d.reshape(orig_shape)

    x2d = flat.reshape(rows, _LANE)  # lane-dense 2D view (bitcast)

    # Target ~2 MiB per block; clamp to the array and round to the packed
    # sublane multiple. No degenerate "shrink until divides" loop: partial
    # edge blocks are handled by pl.cdiv + Pallas masking.
    target_rows = (2 * 1024 * 1024) // (_LANE * itemsize)
    block_rows = min(rows, target_rows)
    block_rows = max(sub_min, (block_rows // sub_min) * sub_min)
    grid = (pl.cdiv(rows, block_rows),)

    out2d = pl.pallas_call(
        _identity_kernel,
        out_shape=jax.ShapeDtypeStruct((rows, _LANE), x.dtype),
        grid=grid,
        in_specs=[pl.BlockSpec((block_rows, _LANE), lambda i: (i, 0))],
        out_specs=pl.BlockSpec((block_rows, _LANE), lambda i: (i, 0)),
        input_output_aliases={0: 0},
        compiler_params=pltpu.CompilerParams(
            dimension_semantics=("parallel",),
            vmem_limit_bytes=32 * 1024 * 1024,
        ),
    )(x2d)

    return out2d.reshape(orig_shape)


if __name__ == "__main__":
    key = jax.random.PRNGKey(0)
    x = jax.random.normal(key, (2, 4, 16, 16), dtype=jnp.float32)

    nop_jit = jax.jit(nop_forward)
    y = nop_jit(x)
    y = jax.block_until_ready(y)

    assert y.shape == x.shape, (y.shape, x.shape)
    assert y.dtype == x.dtype, (y.dtype, x.dtype)
    assert bool(jnp.all(y == x)), "identity kernel output mismatch"

    print("KERNEL_OK")
</pallas_src>

<mosaic_0001>
module attributes {stable_mosaic.version = 11 : i64} {
  func.func @_identity_kernel(%arg0: i32, %arg1: memref<16x128xf32, #tpu.memory_space<vmem>>, %arg2: memref<16x128xf32, #tpu.memory_space<vmem>>) attributes {dimension_semantics = [#tpu.dimension_semantics<parallel>], iteration_bounds = array<i64: 1>, scalar_prefetch = 0 : i64, scratch_operands = 0 : i64, tpu.core_type = #tpu.core_type<tc>, window_params = [{transform_indices = @transform_0, window_bounds = array<i64: 16, 128>}, {transform_indices = @transform_1, window_bounds = array<i64: 16, 128>}]} {
    %c0 = arith.constant 0 : index
    %c0_0 = arith.constant 0 : index
    %0 = vector.load %arg1[%c0, %c0_0] : memref<16x128xf32, #tpu.memory_space<vmem>>, vector<16x128xf32>
    %c0_1 = arith.constant 0 : index
    %c0_2 = arith.constant 0 : index
    %1 = vector.load %arg2[%c0_1, %c0_2] : memref<16x128xf32, #tpu.memory_space<vmem>>, vector<16x128xf32>
    tpu.vector_store %arg2[%c0_1, %c0_2], %0 {strides = array<i32>} : memref<16x128xf32, #tpu.memory_space<vmem>>, vector<16x128xf32>,
    return
  }
  func.func @transform_0(%arg0: i32) -> (i32, i32) {
    %c0_i32 = arith.constant 0 : i32
    %c0_i32_0 = arith.constant 0 : i32
    return %arg0, %c0_i32 : i32, i32
  }
  func.func @transform_1(%arg0: i32) -> (i32, i32) {
    %c0_i32 = arith.constant 0 : i32
    %c0_i32_0 = arith.constant 0 : i32
    return %arg0, %c0_i32 : i32, i32
  }
}

</mosaic_0001>

<llo_original>
// kernel: nop_forward.1
$region0: #{nop_forward.1}
  #allocation0 [shape = 'u32[]', space=smem, size = 0x4, offset = 0x4, fixed_abs, tag = 'smem constant byte address 0x4 - core index']
  #allocation1 [shape = 'u32[144,128]{1,0:T(1,128)}', space=vmem, size = 0x12000, scoped, tag = 'internal scratch']
  %s0 = inlined_call_operand.vmem [shape: f32[16,128], index: 0, kind: input, shape index: {}, may-alias: {0,1}]
  %s1 = inlined_call_operand.vmem [shape: f32[16,128], index: 1, kind: output, shape index: {}, may-alias: {0,1}]
  %s2 = sld [smem:[#allocation0]]
  $region14: #{nop_forward.1} parent=0
    _
  %s4 = ssub.s32 1, %s2
  %s5 = scalar_select 0, %s4, %s2
  // Predicated region
  $region2: #{nop_forward.1} parent=0 // pred_check
    _
  $region3: #{nop_forward.1} parent=0 // pred_check_branch
    %7 = sbr.rel (0) target = $region5
  $region4: #{nop_forward.1} parent=0 // pred_region
    _
  $region5: #{nop_forward.1} parent=0 // pred_fallthru
    _
  %v8 = vld [vmem:[%s0] sm:$0xff]
  %v9 = vld [vmem:[%s0 + $0x8] sm:$0xff]
  %10 = vst [vmem:[%s1] sm:$0xff] %v8
  %11 = vst [vmem:[%s1 + $0x8] sm:$0xff] %v9
  // Predicated region
  $region6: #{nop_forward.1} parent=0 // pred_check
    _
  $region7: #{nop_forward.1} parent=0 // pred_check_branch
    %13 = sbr.rel (0) target = $region9
  $region8: #{nop_forward.1} parent=0 // pred_region
    _
  $region9: #{nop_forward.1} parent=0 // pred_fallthru
    _
  // Predicated region
  $region10: #{nop_forward.1} parent=0 // pred_check
    _
  $region11: #{nop_forward.1} parent=0 // pred_check_branch
    %15 = sbr.rel (0) target = $region13
  $region12: #{nop_forward.1} parent=0 // pred_region
    _
  $region13: #{nop_forward.1} parent=0 // pred_fallthru
    _

</llo_original>
